<compile_context>
chip_gen: v7x
topology: tpu7x:2x2x1
jax: 0.10.0
libtpu: 0.0.40
codegen_flags: <defaults>
</compile_context>

<pallas_src>
import functools
import math

import jax
import jax.numpy as jnp
from jax.experimental import pallas as pl
from jax.experimental.pallas import tpu as pltpu

_VALID_REW_SIGNS = ('free', 'neg', 'pos', 'pos_sigmoid', 'neg_sigmoid', 'tanh')
_TRANSCENDENTAL_SIGNS = ('pos_sigmoid', 'neg_sigmoid', 'tanh')


def _apply_rew(y, rew_sign, rew_mag):
    # Static Python branch, resolved at trace time; f32 on the VPU/EUP.
    if rew_sign == 'free':
        return y
    if rew_sign == 'neg':
        return -jnp.maximum(y, 0.0)
    if rew_sign == 'pos':
        return jnp.maximum(y, 0.0)
    if rew_sign == 'pos_sigmoid':
        return rew_mag * jax.nn.sigmoid(y)
    if rew_sign == 'neg_sigmoid':
        return -rew_mag * jax.nn.sigmoid(y)
    return rew_mag * jnp.tanh(y)          # 'tanh' (validated in the wrapper)


def _mlp_kernel(x_ref, w1_ref, b1_ref, w2_ref, b2_ref, w3_ref, b3_ref,
                w4_ref, b4_ref, o_ref, *, rew_sign, rew_mag, final_reduce):
    # x arrives f32 from HBM; bf16 cast happens here (free VPU filler).
    x = x_ref[...].astype(jnp.bfloat16)
    # Layers 1-3: bf16 operands on the MXU, f32 accumulation, f32 bias + ReLU.
    h = jnp.dot(x, w1_ref[...], preferred_element_type=jnp.float32) + b1_ref[...]
    h = jnp.maximum(h, 0.0)
    h = jnp.dot(h.astype(jnp.bfloat16), w2_ref[...],
                preferred_element_type=jnp.float32) + b2_ref[...]
    h = jnp.maximum(h, 0.0)
    h = jnp.dot(h.astype(jnp.bfloat16), w3_ref[...],
                preferred_element_type=jnp.float32) + b3_ref[...]
    h = jnp.maximum(h, 0.0)

    if final_reduce:
        # out_dim == 1.  Contract w4(1,K) with h(tm,K) on K (f32 MXU, same
        # "A @ B^T" dimension numbers as attention scores) so the tm results
        # land on the lane axis: (1, tm).  This keeps the output store
        # lane-dense instead of a (tm,1) 1-lane masked store + 4B-row DMA.
        y = jnp.einsum('od,td->ot', w4_ref[...], h,
                       preferred_element_type=jnp.float32) + b4_ref[...]
        out = _apply_rew(y, rew_sign, rew_mag)                 # (1, tm) f32
        o_ref[...] = out.reshape(o_ref.shape).astype(o_ref.dtype)
    else:
        y = jnp.dot(h.astype(jnp.bfloat16), w4_ref[...],
                    preferred_element_type=jnp.float32) + b4_ref[...]
        out = _apply_rew(y, rew_sign, rew_mag)
        o_ref[...] = out.astype(o_ref.dtype)


def _round_up(v, m):
    return ((v + m - 1) // m) * m


def net_mlp_forward(x, params, rew_sign, rew_mag, block_rows=2048):
    """Fused forward pass of net_MLP. x: (B, n_dim) f32, returns (B, out_dim) f32."""
    if rew_sign not in _VALID_REW_SIGNS:
        # The torch module silently skips fc4 for an unknown rew_sign; we treat
        # that as a config error instead.
        raise ValueError(f"unknown rew_sign: {rew_sign!r}")
    w1, b1, w2, b2, w3, b3, w4, b4 = params
    B, n_dim = x.shape
    fc1_dim = w1.shape[1]
    fc2_dim = w2.shape[1]
    fc3_dim, out_dim = w4.shape

    # Weights cast to bf16 once (MXU-native); biases / epilogue stay f32.
    # x stays f32 -- the bf16 cast happens inside the kernel.
    w1_bf = w1.astype(jnp.bfloat16)
    w2_bf = w2.astype(jnp.bfloat16)
    w3_bf = w3.astype(jnp.bfloat16)

    final_reduce = (out_dim == 1)
    if final_reduce:
        w4_pass = w4.reshape(1, fc3_dim)        # f32 weight row (lane-dense head)
    else:
        w4_pass = w4.astype(jnp.bfloat16)       # (fc3_dim, out_dim) bf16 matmul

    # Batch tile: as large as possible (default 2048 -- total VMEM stays well
    # under every generation's limit) but no larger than ~ceil(B/2) rounded to
    # 8 sublanes, so the "parallel" batch axis keeps >=2 steps for v7x's two
    # TensorCores.  No jnp.pad: grid = cdiv(B, tm); Pallas masks the tail block.
    cap = max(8, _round_up(int(block_rows), 8))
    tm = min(cap, max(8, _round_up(pl.cdiv(B, 2), 8)))
    n_blocks = pl.cdiv(B, tm)

    kernel = functools.partial(_mlp_kernel, rew_sign=rew_sign,
                               rew_mag=float(rew_mag), final_reduce=final_reduce)

    const = lambda i: (0, 0)   # weights/biases: constant block -> VMEM-resident
    in_specs = [
        pl.BlockSpec((tm, n_dim), lambda i: (i, 0)),
        pl.BlockSpec(w1_bf.shape, const), pl.BlockSpec(b1.shape, const),
        pl.BlockSpec(w2_bf.shape, const), pl.BlockSpec(b2.shape, const),
        pl.BlockSpec(w3_bf.shape, const), pl.BlockSpec(b3.shape, const),
        pl.BlockSpec(w4_pass.shape, const), pl.BlockSpec(b4.shape, const),
    ]

    if final_reduce:
        # Lane-dense output: one (1, tm) row per grid step; reshaped back to
        # (B, 1) in the wrapper (HBM layout is already row-major contiguous).
        out_shape = jax.ShapeDtypeStruct((n_blocks, 1, tm), jnp.float32)
        out_specs = pl.BlockSpec((1, 1, tm), lambda i: (i, 0, 0))
    else:
        out_shape = jax.ShapeDtypeStruct((B, out_dim), jnp.float32)
        out_specs = pl.BlockSpec((tm, out_dim), lambda i: (i, 0))

    # Advisory cost estimate for XLA's scheduler.
    flops = 2 * B * (n_dim * fc1_dim + fc1_dim * fc2_dim
                     + fc2_dim * fc3_dim + fc3_dim * out_dim)
    transcendentals = B * out_dim if rew_sign in _TRANSCENDENTAL_SIGNS else 0
    weight_bytes = ((w1_bf.size + w2_bf.size + w3_bf.size) * 2
                    + w4_pass.size * w4_pass.dtype.itemsize
                    + (b1.size + b2.size + b3.size + b4.size) * 4)
    bytes_accessed = B * n_dim * 4 + B * out_dim * 4 + weight_bytes

    out = pl.pallas_call(
        kernel,
        out_shape=out_shape,
        grid=(n_blocks,),
        in_specs=in_specs,
        out_specs=out_specs,
        compiler_params=pltpu.CompilerParams(
            dimension_semantics=("parallel",),        # both TCs on v7x; harmless on v5e/v6e
            vmem_limit_bytes=32 * 1024 * 1024),       # v5e default scoped VMEM is only 16 MiB
        cost_estimate=pl.CostEstimate(flops=flops,
                                      transcendentals=transcendentals,
                                      bytes_accessed=bytes_accessed),
    )(x, w1_bf, b1, w2_bf, b2, w3_bf, b3, w4_pass, b4)

    if final_reduce:
        out = out.reshape(n_blocks * tm, 1)
        if n_blocks * tm != B:
            out = out[:B]                     # drop masked-tail garbage rows only
    return out


def init_linear(key, fan_in, fan_out):
    """torch.nn.Linear-style init: U(-1/sqrt(fan_in), 1/sqrt(fan_in)).
    Weight returned pre-transposed as (fan_in, fan_out)."""
    kw, kb = jax.random.split(key)
    bound = 1.0 / math.sqrt(fan_in)
    w = jax.random.uniform(kw, (fan_in, fan_out), jnp.float32, -bound, bound)
    b = jax.random.uniform(kb, (1, fan_out), jnp.float32, -bound, bound)
    return w, b


def make_params(key, input_size, FC1_dim=256, FC2_dim=256, FC3_dim=256, out_dim=1):
    k1, k2, k3, k4 = jax.random.split(key, 4)
    w1, b1 = init_linear(k1, input_size, FC1_dim)
    w2, b2 = init_linear(k2, FC1_dim, FC2_dim)
    w3, b3 = init_linear(k3, FC2_dim, FC3_dim)
    w4, b4 = init_linear(k4, FC3_dim, out_dim)
    return (w1, b1, w2, b2, w3, b3, w4, b4)


def reference_forward(x, params, rew_sign, rew_mag):
    """Pure-JAX reference mirroring the kernel's precision (bf16 matmul operands,
    f32 accumulation; final out_dim==1 head in f32)."""
    w1, b1, w2, b2, w3, b3, w4, b4 = params

    def mm(a, w):
        return jnp.dot(a.astype(jnp.bfloat16), w.astype(jnp.bfloat16),
                       preferred_element_type=jnp.float32)

    h = jnp.maximum(mm(x, w1) + b1, 0.0)
    h = jnp.maximum(mm(h, w2) + b2, 0.0)
    h = jnp.maximum(mm(h, w3) + b3, 0.0)
    if w4.shape[1] == 1:
        y = h @ w4 + b4                      # f32, matches in-kernel f32 head
    else:
        y = mm(h, w4) + b4
    if rew_sign == 'free':
        return y
    if rew_sign == 'neg':
        return -jnp.maximum(y, 0.0)
    if rew_sign == 'pos':
        return jnp.maximum(y, 0.0)
    if rew_sign == 'pos_sigmoid':
        return rew_mag * jax.nn.sigmoid(y)
    if rew_sign == 'neg_sigmoid':
        return -rew_mag * jax.nn.sigmoid(y)
    if rew_sign == 'tanh':
        return rew_mag * jnp.tanh(y)
    raise ValueError(rew_sign)


if __name__ == "__main__":
    key = jax.random.PRNGKey(0)
    k_params, k_x1, k_x2, k_p4, k_x3 = jax.random.split(key, 5)

    input_size = 32   # n_dim
    params = make_params(k_params, input_size)

    # Case 1: tiny batch (single block), tanh epilogue, out_dim==1 lane-dense head.
    x_small = jax.random.normal(k_x1, (8, input_size), jnp.float32)
    out_small = jax.block_until_ready(net_mlp_forward(x_small, params, 'tanh', 2.0))
    ref_small = reference_forward(x_small, params, 'tanh', 2.0)
    assert out_small.shape == (8, 1)
    assert jnp.allclose(out_small, ref_small, atol=2e-3, rtol=2e-3), "mismatch (small batch)"

    # Case 2: ragged batch -> tm=152, 2 grid steps (megacore-shaped), masked tail
    # rows, resident weights, lane-dense (n_blocks,1,tm) output, pos_sigmoid.
    x_big = jax.random.normal(k_x2, (300, input_size), jnp.float32)
    out_big = jax.block_until_ready(net_mlp_forward(x_big, params, 'pos_sigmoid', 3.0))
    ref_big = reference_forward(x_big, params, 'pos_sigmoid', 3.0)
    assert out_big.shape == (300, 1)
    assert jnp.allclose(out_big, ref_big, atol=2e-3, rtol=2e-3), "mismatch (batched grid)"

    # Case 3: out_dim > 1 exercises the plain MXU matmul head, 'free' epilogue.
    params4 = make_params(k_p4, input_size, out_dim=4)
    x_mid = jax.random.normal(k_x3, (16, input_size), jnp.float32)
    out_mid = jax.block_until_ready(net_mlp_forward(x_mid, params4, 'free', 1.0))
    ref_mid = reference_forward(x_mid, params4, 'free', 1.0)
    assert out_mid.shape == (16, 4)
    assert jnp.allclose(out_mid, ref_mid, atol=2e-3, rtol=2e-3), "mismatch (out_dim>1)"

    print("KERNEL_OK")
</pallas_src>

<mosaic_0001>
module attributes {stable_mosaic.version = 11 : i64} {
  func.func @_mlp_kernel(%arg0: i32, %arg1: memref<8x32xf32, #tpu.memory_space<vmem>>, %arg2: memref<32x256xbf16, #tpu.memory_space<vmem>>, %arg3: memref<1x256xf32, #tpu.memory_space<vmem>>, %arg4: memref<256x256xbf16, #tpu.memory_space<vmem>>, %arg5: memref<1x256xf32, #tpu.memory_space<vmem>>, %arg6: memref<256x256xbf16, #tpu.memory_space<vmem>>, %arg7: memref<1x256xf32, #tpu.memory_space<vmem>>, %arg8: memref<1x256xf32, #tpu.memory_space<vmem>>, %arg9: memref<1x1xf32, #tpu.memory_space<vmem>>, %arg10: memref<1x1x8xf32, #tpu.memory_space<vmem>>) attributes {dimension_semantics = [#tpu.dimension_semantics<parallel>], iteration_bounds = array<i64: 1>, scalar_prefetch = 0 : i64, scratch_operands = 0 : i64, tpu.core_type = #tpu.core_type<tc>, window_params = [{transform_indices = @transform_0, window_bounds = array<i64: 8, 32>}, {pipeline_mode = #tpu.pipeline_mode<synchronous>, transform_indices = @transform_1, window_bounds = array<i64: 32, 256>}, {pipeline_mode = #tpu.pipeline_mode<synchronous>, transform_indices = @transform_2, window_bounds = array<i64: 1, 256>}, {pipeline_mode = #tpu.pipeline_mode<synchronous>, transform_indices = @transform_3, window_bounds = array<i64: 256, 256>}, {pipeline_mode = #tpu.pipeline_mode<synchronous>, transform_indices = @transform_4, window_bounds = array<i64: 1, 256>}, {pipeline_mode = #tpu.pipeline_mode<synchronous>, transform_indices = @transform_5, window_bounds = array<i64: 256, 256>}, {pipeline_mode = #tpu.pipeline_mode<synchronous>, transform_indices = @transform_6, window_bounds = array<i64: 1, 256>}, {pipeline_mode = #tpu.pipeline_mode<synchronous>, transform_indices = @transform_7, window_bounds = array<i64: 1, 256>}, {pipeline_mode = #tpu.pipeline_mode<synchronous>, transform_indices = @transform_8, window_bounds = array<i64: 1, 1>}, {transform_indices = @transform_9, window_bounds = array<i64: 1, 1, 8>}]} {
    %c0 = arith.constant 0 : index
    %c0_0 = arith.constant 0 : index
    %0 = vector.load %arg1[%c0, %c0_0] : memref<8x32xf32, #tpu.memory_space<vmem>>, vector<8x32xf32>
    %1 = arith.truncf %0 : vector<8x32xf32> to vector<8x32xbf16>
    %c0_1 = arith.constant 0 : index
    %c0_2 = arith.constant 0 : index
    %2 = vector.load %arg2[%c0_1, %c0_2] : memref<32x256xbf16, #tpu.memory_space<vmem>>, vector<32x256xbf16>
    %cst = arith.constant dense<0.000000e+00> : vector<8x256xf32>
    %3 = tpu.matmul %1, %2, %cst {dimension_numbers = #tpu.dot_dimension_numbers<[1], [0], [0], [1], [0, 0, 1, 1], [], []>} : vector<8x32xbf16>, vector<32x256xbf16>, vector<8x256xf32> -> vector<8x256xf32>
    %c0_3 = arith.constant 0 : index
    %c0_4 = arith.constant 0 : index
    %4 = vector.load %arg3[%c0_3, %c0_4] : memref<1x256xf32, #tpu.memory_space<vmem>>, vector<1x256xf32>
    %5 = vector.broadcast %4 : vector<1x256xf32> to vector<8x256xf32>
    %6 = arith.addf %3, %5 : vector<8x256xf32>
    %cst_5 = arith.constant 0.000000e+00 : f32
    %7 = vector.broadcast %cst_5 : f32 to vector<8x256xf32>
    %8 = arith.maximumf %6, %7 : vector<8x256xf32>
    %9 = arith.truncf %8 : vector<8x256xf32> to vector<8x256xbf16>
    %c0_6 = arith.constant 0 : index
    %c0_7 = arith.constant 0 : index
    %10 = vector.load %arg4[%c0_6, %c0_7] : memref<256x256xbf16, #tpu.memory_space<vmem>>, vector<256x256xbf16>
    %cst_8 = arith.constant dense<0.000000e+00> : vector<8x256xf32>
    %11 = tpu.matmul %9, %10, %cst_8 {dimension_numbers = #tpu.dot_dimension_numbers<[1], [0], [0], [1], [0, 0, 1, 1], [], []>} : vector<8x256xbf16>, vector<256x256xbf16>, vector<8x256xf32> -> vector<8x256xf32>
    %c0_9 = arith.constant 0 : index
    %c0_10 = arith.constant 0 : index
    %12 = vector.load %arg5[%c0_9, %c0_10] : memref<1x256xf32, #tpu.memory_space<vmem>>, vector<1x256xf32>
    %13 = vector.broadcast %12 : vector<1x256xf32> to vector<8x256xf32>
    %14 = arith.addf %11, %13 : vector<8x256xf32>
    %cst_11 = arith.constant 0.000000e+00 : f32
    %15 = vector.broadcast %cst_11 : f32 to vector<8x256xf32>
    %16 = arith.maximumf %14, %15 : vector<8x256xf32>
    %17 = arith.truncf %16 : vector<8x256xf32> to vector<8x256xbf16>
    %c0_12 = arith.constant 0 : index
    %c0_13 = arith.constant 0 : index
    %18 = vector.load %arg6[%c0_12, %c0_13] : memref<256x256xbf16, #tpu.memory_space<vmem>>, vector<256x256xbf16>
    %cst_14 = arith.constant dense<0.000000e+00> : vector<8x256xf32>
    %19 = tpu.matmul %17, %18, %cst_14 {dimension_numbers = #tpu.dot_dimension_numbers<[1], [0], [0], [1], [0, 0, 1, 1], [], []>} : vector<8x256xbf16>, vector<256x256xbf16>, vector<8x256xf32> -> vector<8x256xf32>
    %c0_15 = arith.constant 0 : index
    %c0_16 = arith.constant 0 : index
    %20 = vector.load %arg7[%c0_15, %c0_16] : memref<1x256xf32, #tpu.memory_space<vmem>>, vector<1x256xf32>
    %21 = vector.broadcast %20 : vector<1x256xf32> to vector<8x256xf32>
    %22 = arith.addf %19, %21 : vector<8x256xf32>
    %cst_17 = arith.constant 0.000000e+00 : f32
    %23 = vector.broadcast %cst_17 : f32 to vector<8x256xf32>
    %24 = arith.maximumf %22, %23 : vector<8x256xf32>
    %c0_18 = arith.constant 0 : index
    %c0_19 = arith.constant 0 : index
    %25 = vector.load %arg8[%c0_18, %c0_19] : memref<1x256xf32, #tpu.memory_space<vmem>>, vector<1x256xf32>
    "tpu.trace_start"() <{level = 10 : i32, message = "od,td->ot"}> : () -> ()
    %cst_20 = arith.constant dense<0.000000e+00> : vector<1x8xf32>
    %26 = tpu.matmul %25, %24, %cst_20 {dimension_numbers = #tpu.dot_dimension_numbers<[1], [1], [0], [0], [0, 0, 1, 0], [], []>} : vector<1x256xf32>, vector<8x256xf32>, vector<1x8xf32> -> vector<1x8xf32>
    "tpu.trace_stop"() : () -> ()
    %c0_21 = arith.constant 0 : index
    %c0_22 = arith.constant 0 : index
    %27 = vector.load %arg9[%c0_21, %c0_22] : memref<1x1xf32, #tpu.memory_space<vmem>>, vector<1x1xf32>
    %28 = vector.broadcast %27 : vector<1x1xf32> to vector<1x8xf32>
    %29 = arith.addf %26, %28 : vector<1x8xf32>
    %30 = math.tanh %29 : vector<1x8xf32>
    %cst_23 = arith.constant 2.000000e+00 : f32
    %31 = vector.broadcast %cst_23 : f32 to vector<1x8xf32>
    %32 = arith.mulf %31, %30 : vector<1x8xf32>
    %33 = vector.shape_cast %32 : vector<1x8xf32> to vector<1x1x8xf32>
    %c0_24 = arith.constant 0 : index
    %c0_25 = arith.constant 0 : index
    %c0_26 = arith.constant 0 : index
    %34 = vector.load %arg10[%c0_24, %c0_25, %c0_26] : memref<1x1x8xf32, #tpu.memory_space<vmem>>, vector<1x1x8xf32>
    tpu.vector_store %arg10[%c0_24, %c0_25, %c0_26], %33 {strides = array<i32>} : memref<1x1x8xf32, #tpu.memory_space<vmem>>, vector<1x1x8xf32>,
    return
  }
  func.func @transform_0(%arg0: i32) -> (i32, i32) {
    %c0_i32 = arith.constant 0 : i32
    %c0_i32_0 = arith.constant 0 : i32
    return %arg0, %c0_i32 : i32, i32
  }
  func.func @transform_1(%arg0: i32) -> (i32, i32) {
    %c0_i32 = arith.constant 0 : i32
    %c0_i32_0 = arith.constant 0 : i32
    %c0_i32_1 = arith.constant 0 : i32
    return %c0_i32, %c0_i32_0 : i32, i32
  }
  func.func @transform_2(%arg0: i32) -> (i32, i32) {
    %c0_i32 = arith.constant 0 : i32
    %c0_i32_0 = arith.constant 0 : i32
    %c0_i32_1 = arith.constant 0 : i32
    return %c0_i32, %c0_i32_0 : i32, i32
  }
  func.func @transform_3(%arg0: i32) -> (i32, i32) {
    %c0_i32 = arith.constant 0 : i32
    %c0_i32_0 = arith.constant 0 : i32
    %c0_i32_1 = arith.constant 0 : i32
    return %c0_i32, %c0_i32_0 : i32, i32
  }
  func.func @transform_4(%arg0: i32) -> (i32, i32) {
    %c0_i32 = arith.constant 0 : i32
    %c0_i32_0 = arith.constant 0 : i32
    %c0_i32_1 = arith.constant 0 : i32
    return %c0_i32, %c0_i32_0 : i32, i32
  }
  func.func @transform_5(%arg0: i32) -> (i32, i32) {
    %c0_i32 = arith.constant 0 : i32
    %c0_i32_0 = arith.constant 0 : i32
    %c0_i32_1 = arith.constant 0 : i32
    return %c0_i32, %c0_i32_0 : i32, i32
  }
  func.func @transform_6(%arg0: i32) -> (i32, i32) {
    %c0_i32 = arith.constant 0 : i32
    %c0_i32_0 = arith.constant 0 : i32
    %c0_i32_1 = arith.constant 0 : i32
    return %c0_i32, %c0_i32_0 : i32, i32
  }
  func.func @transform_7(%arg0: i32) -> (i32, i32) {
    %c0_i32 = arith.constant 0 : i32
    %c0_i32_0 = arith.constant 0 : i32
    %c0_i32_1 = arith.constant 0 : i32
    return %c0_i32, %c0_i32_0 : i32, i32
  }
  func.func @transform_8(%arg0: i32) -> (i32, i32) {
    %c0_i32 = arith.constant 0 : i32
    %c0_i32_0 = arith.constant 0 : i32
    %c0_i32_1 = arith.constant 0 : i32
    return %c0_i32, %c0_i32_0 : i32, i32
  }
  func.func @transform_9(%arg0: i32) -> (i32, i32, i32) {
    %c0_i32 = arith.constant 0 : i32
    %c0_i32_0 = arith.constant 0 : i32
    %c0_i32_1 = arith.constant 0 : i32
    return %arg0, %c0_i32, %c0_i32_0 : i32, i32, i32
  }
}

</mosaic_0001>

<llo_original>
// kernel: tpu_custom_call.1
$region0: #{tpu_custom_call.1}
  #allocation0 [shape = 'u32[]', space=smem, size = 0x4, offset = 0x4, fixed_abs, tag = 'smem constant byte address 0x4 - core index']
  #allocation1 [shape = 'u32[144,128]{1,0:T(1,128)}', space=vmem, size = 0x12000, scoped, tag = 'internal scratch']
  #allocation2 [shape = 'f32[1,1]{1,0:T(1,128)S(1)}', space=vmem, size = 0x200, scoped, tag = 'scoped memory for tpu_custom_call.1']
  %s0 = inlined_call_operand.hbm [shape: f32[8,32], index: 0, kind: input, shape index: {}]
  %s1 = inlined_call_operand.hbm [shape: bf16[32,256], index: 1, kind: input, shape index: {}]
  %s2 = inlined_call_operand.vmem [shape: f32[1,256], index: 2, kind: input, shape index: {}]
  %s3 = inlined_call_operand.hbm [shape: bf16[256,256], index: 3, kind: input, shape index: {}]
  %s4 = inlined_call_operand.vmem [shape: f32[1,256], index: 4, kind: input, shape index: {}]
  %s5 = inlined_call_operand.hbm [shape: bf16[256,256], index: 5, kind: input, shape index: {}]
  %s6 = inlined_call_operand.vmem [shape: f32[1,256], index: 6, kind: input, shape index: {}]
  %s7 = inlined_call_operand.vmem [shape: f32[1,256], index: 7, kind: input, shape index: {}]
  %s8 = inlined_call_operand.<no memory space> [shape: f32[1,1], index: 8, kind: input, shape index: {}]
  %s9 = inlined_call_operand.hbm [shape: f32[1,1,8], index: 9, kind: output, shape index: {}]
  %s10 = sld [smem:[#allocation0]]
  $region62: #{tpu_custom_call.1} parent=0
    _
  %s12 = ssub.s32 1, %s10
  %s13 = scalar_select 0, %s12, %s10
  %v14 = vstv %s8
  %15 = vst [vmem:[#allocation2] sm:$0x1] %v14
  $region1: #{tpu_custom_call.1} parent=0
    #allocation3 [shape = 'u8[4096]{0}', space=vmem, size = 0x1000, scoped, tag = 'input window, operand 0, single buffered']
    #allocation4 [shape = 's32[1]{0}', space=sflag, size = 0x4, scoped, tag = 'scoped memory for tpu_custom_call.1']
    #allocation5 [shape = 's32[1]{0}', space=sflag, size = 0x4, scoped, tag = 'scoped memory for tpu_custom_call.1']
    #allocation6 [shape = 'u8[16384]{0}', space=vmem, size = 0x4000, scoped, tag = 'input window, operand 1, single buffered']
    #allocation7 [shape = 's32[1]{0}', space=sflag, size = 0x4, scoped, tag = 'scoped memory for tpu_custom_call.1']
    #allocation8 [shape = 'u8[131072]{0}', space=vmem, size = 0x20000, scoped, tag = 'input window, operand 3, single buffered']
    #allocation9 [shape = 'u8[131072]{0}', space=vmem, size = 0x20000, scoped, tag = 'input window, operand 5, single buffered']
    #allocation10 [shape = 's32[1]{0}', space=sflag, size = 0x4, scoped, tag = 'scoped memory for tpu_custom_call.1']
    #allocation11 [shape = 'u8[512]{0}', space=vmem, size = 0x400, scoped, tag = 'output window, operand 0, single buffered']
    %16 = vsyncpa [#allocation4], 0
    %17 = vsyncpa [#allocation7], 0
    %18 = vsyncpa [#allocation10], 0
    %19 = vsyncpa [#allocation5], 0
    // Predicated region
    $region2: #{tpu_custom_call.1} parent=1 // pred_check
      _
    $region3: #{tpu_custom_call.1} parent=1 // pred_check_branch
      %21 = sbr.rel (0) target = $region5
    $region4: #{tpu_custom_call.1} parent=1 // pred_region
      %s23 = ssub.s32 128, 128
      %24 = vsyncadd [#allocation4], %s23
      %s26 = sshll.u32 [#allocation3], 4
      %s27 = int_to_ptr.vmem [resolvable:$true] %s26
      %29 = dma.hbm_to_vmem [thread:$0]  %s0, 128, %s27, [#allocation4]
    $region5: #{tpu_custom_call.1} parent=1 // pred_fallthru
      _
    // Predicated region
    $region6: #{tpu_custom_call.1} parent=1 // pred_check
      _
    $region7: #{tpu_custom_call.1} parent=1 // pred_check_branch
      %31 = sbr.rel (0) target = $region9
    $region8: #{tpu_custom_call.1} parent=1 // pred_region
      %s33 = ssub.s32 512, 512
      %34 = vsyncadd [#allocation7], %s33
      %s35 = sshll.u32 [#allocation6], 4
      %s36 = int_to_ptr.vmem [resolvable:$true] %s35
      %41 = dma.hbm_to_vmem [thread:$0]  %s1, 512, %s36, [#allocation7], 128, 128, 8
    $region9: #{tpu_custom_call.1} parent=1 // pred_fallthru
      _
    // Predicated region
    $region10: #{tpu_custom_call.1} parent=1 // pred_check
      _
    $region11: #{tpu_custom_call.1} parent=1 // pred_check_branch
      %43 = sbr.rel (0) target = $region13
    $region12: #{tpu_custom_call.1} parent=1 // pred_region
      _
    $region13: #{tpu_custom_call.1} parent=1 // pred_fallthru
      _
    // Predicated region
    $region14: #{tpu_custom_call.1} parent=1 // pred_check
      _
    $region15: #{tpu_custom_call.1} parent=1 // pred_check_branch
      %45 = sbr.rel (0) target = $region17
    $region16: #{tpu_custom_call.1} parent=1 // pred_region
      %s47 = ssub.s32 4096, 4096
      %48 = vsyncadd [#allocation7], %s47
      %s49 = sshll.u32 [#allocation8], 4
      %s50 = int_to_ptr.vmem [resolvable:$true] %s49
      %55 = dma.hbm_to_vmem [thread:$0]  %s3, 4096, %s50, [#allocation7], 128, 128, 8
    $region17: #{tpu_custom_call.1} parent=1 // pred_fallthru
      _
    // Predicated region
    $region18: #{tpu_custom_call.1} parent=1 // pred_check
      _
    $region19: #{tpu_custom_call.1} parent=1 // pred_check_branch
      %57 = sbr.rel (0) target = $region21
    $region20: #{tpu_custom_call.1} parent=1 // pred_region
      _
    $region21: #{tpu_custom_call.1} parent=1 // pred_fallthru
      _
    // Predicated region
    $region22: #{tpu_custom_call.1} parent=1 // pred_check
      _
    $region23: #{tpu_custom_call.1} parent=1 // pred_check_branch
      %59 = sbr.rel (0) target = $region25
    $region24: #{tpu_custom_call.1} parent=1 // pred_region
      %s61 = ssub.s32 4096, 4096
      %62 = vsyncadd [#allocation10], %s61
      %s63 = sshll.u32 [#allocation9], 4
      %s64 = int_to_ptr.vmem [resolvable:$true] %s63
      %69 = dma.hbm_to_vmem [thread:$0]  %s5, 4096, %s64, [#allocation10], 128, 128, 8
    $region25: #{tpu_custom_call.1} parent=1 // pred_fallthru
      _
    // Predicated region
    $region26: #{tpu_custom_call.1} parent=1 // pred_check
      _
    $region27: #{tpu_custom_call.1} parent=1 // pred_check_branch
      %71 = sbr.rel (0) target = $region29
    $region28: #{tpu_custom_call.1} parent=1 // pred_region
      _
    $region29: #{tpu_custom_call.1} parent=1 // pred_fallthru
      _
    // Predicated region
    $region30: #{tpu_custom_call.1} parent=1 // pred_check
      _
    $region31: #{tpu_custom_call.1} parent=1 // pred_check_branch
      %73 = sbr.rel (0) target = $region33
    $region32: #{tpu_custom_call.1} parent=1 // pred_region
      _
    $region33: #{tpu_custom_call.1} parent=1 // pred_fallthru
      _
    // Predicated region
    $region34: #{tpu_custom_call.1} parent=1 // pred_check
      _
    $region35: #{tpu_custom_call.1} parent=1 // pred_check_branch
      %75 = sbr.rel (0) target = $region37
    $region36: #{tpu_custom_call.1} parent=1 // pred_region
      _
    $region37: #{tpu_custom_call.1} parent=1 // pred_fallthru
      _
    // Predicated region
    $region38: #{tpu_custom_call.1} parent=1 // pred_check
      _
    $region39: #{tpu_custom_call.1} parent=1 // pred_check_branch
      %77 = sbr.rel (0) target = $region41
    $region40: #{tpu_custom_call.1} parent=1 // pred_region
      %78 = dma.done [#allocation4], 128
    $region41: #{tpu_custom_call.1} parent=1 // pred_fallthru
      _
    // Predicated region
    $region42: #{tpu_custom_call.1} parent=1 // pred_check
      _
    $region43: #{tpu_custom_call.1} parent=1 // pred_check_branch
      %80 = sbr.rel (0) target = $region45
    $region44: #{tpu_custom_call.1} parent=1 // pred_region
      %81 = dma.done [#allocation7], 512
    $region45: #{tpu_custom_call.1} parent=1 // pred_fallthru
      _
    // Predicated region
    $region46: #{tpu_custom_call.1} parent=1 // pred_check
      _
    $region47: #{tpu_custom_call.1} parent=1 // pred_check_branch
      %83 = sbr.rel (0) target = $region49
    $region48: #{tpu_custom_call.1} parent=1 // pred_region
      %84 = dma.done [#allocation7], 4096
    $region49: #{tpu_custom_call.1} parent=1 // pred_fallthru
      _
    // Predicated region
    $region50: #{tpu_custom_call.1} parent=1 // pred_check
      _
    $region51: #{tpu_custom_call.1} parent=1 // pred_check_branch
      %86 = sbr.rel (0) target = $region53
    $region52: #{tpu_custom_call.1} parent=1 // pred_region
      %87 = dma.done [#allocation10], 4096
    $region53: #{tpu_custom_call.1} parent=1 // pred_fallthru
      _
    %v89 = vld [vmem:[#allocation3] sm:$0xff]
    %v90 = vpack.c.bf16 %v89, %v89
    %v91 = vld [vmem:[#allocation6] sm:$0xff]
    %v92 = vld [vmem:[#allocation6 + $0x8] sm:$0xff]
    %v93 = vld [vmem:[#allocation6 + $0x10] sm:$0xff]
    %v94 = vld [vmem:[#allocation6 + $0x18] sm:$0xff]
    %v95 = vld [vmem:[%s2] sm:$0x3]
    %v97 = vlaneseq
    %v98 = vshrl.u32 %v97, 7
    %v99 = vsub.s32 0, %v98
    %v100 = vrot.slane %v95, %v99
    %v101 = vlaneseq
    %v102 = vshrl.u32 %v101, 7
    %v103 = vsub.s32 1, %v102
    %v104 = vrot.slane %v95, %v103
    %v111 = vunpack.c.l.b16 %v91
    %v112 = vunpack.c.h.b16 %v91
    %v113 = vunpack.c.l.b16 %v92
    %v114 = vunpack.c.h.b16 %v92
    %v115 = vunpack.c.l.b16 %v93
    %v116 = vunpack.c.h.b16 %v93
    %v117 = vunpack.c.l.b16 %v94
    %v118 = vunpack.c.h.b16 %v94
    %v119 = vpack.c.b16 %v113, %v111
    %v120 = vpack.c.b16 %v114, %v112
    %v121 = vpack.c.b16 %v117, %v115
    %v122 = vpack.c.b16 %v118, %v116
    %vm127 = vcmask 261120
    %v129 = vsel %vm127, %v90, 0
    %131 = vmatprep.subr.bf16.mxu0 %v120
    %132 = vmatpush1.bf16.msra.mxu0 %v119
    %133 = vmatprep.subr.bf16.mxu0 %v122
    %134 = vmatpush1.bf16.msra.mxu0 %v121
    %135 = vmatprep.subr.bf16.mxu0 0
    %136 = vmatpush1.bf16.msra.mxu0 0
    %137 = vmatprep.subr.bf16.mxu0 0
    %138 = vmatpush1.bf16.msra.mxu0 0
    %139 = vmatprep.subr.bf16.mxu0 0
    %140 = vmatpush1.bf16.msra.mxu0 0
    %141 = vmatprep.subr.bf16.mxu0 0
    %142 = vmatpush1.bf16.msra.mxu0 0
    %143 = vmatprep.subr.bf16.mxu0 0
    %144 = vmatpush1.bf16.msra.mxu0 0
    %145 = vmatprep.subr.bf16.mxu0 0
    %146 = vmatpush1.bf16.msra.mxu0 0
    %147 = vmatprep.subr.bf16.mxu0 0
    %148 = vmatpush1.bf16.msra.mxu0 0
    %149 = vmatprep.subr.bf16.mxu0 0
    %150 = vmatpush1.bf16.msra.mxu0 0
    %151 = vmatprep.subr.bf16.mxu0 0
    %152 = vmatpush1.bf16.msra.mxu0 0
    %153 = vmatprep.subr.bf16.mxu0 0
    %154 = vmatpush1.bf16.msra.mxu0 0
    %155 = vmatprep.subr.bf16.mxu0 0
    %156 = vmatpush1.bf16.msra.mxu0 0
    %157 = vmatprep.subr.bf16.mxu0 0
    %158 = vmatpush1.bf16.msra.mxu0 0
    %159 = vmatprep.subr.bf16.mxu0 0
    %160 = vmatpush1.bf16.msra.mxu0 0
    %161 = vmatprep.subr.bf16.mxu0 0
    %162 = vmatpush1.bf16.msra.mxu0 0
    %163 = vmatprep.mubr.bf16.mxu0 0
    %164 = vmatmul.mubr.bf16.gmra.mrb[0].mxu0 %v129
    %v165 = vpop.f32.mrb[0].mxu0
    %v166 = vadd.f32 %v100, %v165
    %v167 = vpop.f32.mrb[0].mxu0
    %v168 = vadd.f32 %v104, %v167
    %v169 = vpop.f32.mrb[0].mxu0
    %v170 = vpop.f32.mrb[0].mxu0
    %171 = vdwg.mxu0
    %v172 = vmax.f32 %v166, 0.0
    %v173 = vmax.f32 %v168, 0.0
    %v174 = vpack.c.bf16 %v172, %v172
    %v175 = vpack.c.bf16 %v173, %v173
    %v176 = vld [vmem:[#allocation8] sm:$0xff]
    %v177 = vld [vmem:[#allocation8 + $0x8] sm:$0xff]
    %v178 = vld [vmem:[#allocation8 + $0x10] sm:$0xff]
    %v179 = vld [vmem:[#allocation8 + $0x18] sm:$0xff]
    %v180 = vld [vmem:[#allocation8 + $0x20] sm:$0xff]
    %v181 = vld [vmem:[#allocation8 + $0x28] sm:$0xff]
    %v182 = vld [vmem:[#allocation8 + $0x30] sm:$0xff]
    %v183 = vld [vmem:[#allocation8 + $0x38] sm:$0xff]
    %v184 = vld [vmem:[#allocation8 + $0x40] sm:$0xff]
    %v185 = vld [vmem:[#allocation8 + $0x48] sm:$0xff]
    %v186 = vld [vmem:[#allocation8 + $0x50] sm:$0xff]
    %v187 = vld [vmem:[#allocation8 + $0x58] sm:$0xff]
    %v188 = vld [vmem:[#allocation8 + $0x60] sm:$0xff]
    %v189 = vld [vmem:[#allocation8 + $0x68] sm:$0xff]
    %v190 = vld [vmem:[#allocation8 + $0x70] sm:$0xff]
    %v191 = vld [vmem:[#allocation8 + $0x78] sm:$0xff]
    %v192 = vld [vmem:[#allocation8 + $0x80] sm:$0xff]
    %v193 = vld [vmem:[#allocation8 + $0x88] sm:$0xff]
    %v194 = vld [vmem:[#allocation8 + $0x90] sm:$0xff]
    %v195 = vld [vmem:[#allocation8 + $0x98] sm:$0xff]
    %v196 = vld [vmem:[#allocation8 + $0xa0] sm:$0xff]
    %v197 = vld [vmem:[#allocation8 + $0xa8] sm:$0xff]
    %v198 = vld [vmem:[#allocation8 + $0xb0] sm:$0xff]
    %v199 = vld [vmem:[#allocation8 + $0xb8] sm:$0xff]
    %v200 = vld [vmem:[#allocation8 + $0xc0] sm:$0xff]
    %v201 = vld [vmem:[#allocation8 + $0xc8] sm:$0xff]
    %v202 = vld [vmem:[#allocation8 + $0xd0] sm:$0xff]
    %v203 = vld [vmem:[#allocation8 + $0xd8] sm:$0xff]
    %v204 = vld [vmem:[#allocation8 + $0xe0] sm:$0xff]
    %v205 = vld [vmem:[#allocation8 + $0xe8] sm:$0xff]
    %v206 = vld [vmem:[#allocation8 + $0xf0] sm:$0xff]
    %v207 = vld [vmem:[#allocation8 + $0xf8] sm:$0xff]
    %v208 = vld [vmem:[%s4] sm:$0x3]
    %v210 = vlaneseq
    %v211 = vshrl.u32 %v210, 7
    %v212 = vsub.s32 0, %v211
    %v213 = vrot.slane %v208, %v212
    %v214 = vlaneseq
    %v215 = vshrl.u32 %v214, 7
    %v216 = vsub.s32 1, %v215
    %v217 = vrot.slane %v208, %v216
    %v252 = vunpack.c.l.b16 %v176
    %v253 = vunpack.c.h.b16 %v176
    %v254 = vunpack.c.l.b16 %v177
    %v255 = vunpack.c.h.b16 %v177
    %v256 = vunpack.c.l.b16 %v178
    %v257 = vunpack.c.h.b16 %v178
    %v258 = vunpack.c.l.b16 %v179
    %v259 = vunpack.c.h.b16 %v179
    %v260 = vunpack.c.l.b16 %v180
    %v261 = vunpack.c.h.b16 %v180
    %v262 = vunpack.c.l.b16 %v181
    %v263 = vunpack.c.h.b16 %v181
    %v264 = vunpack.c.l.b16 %v182
    %v265 = vunpack.c.h.b16 %v182
    %v266 = vunpack.c.l.b16 %v183
    %v267 = vunpack.c.h.b16 %v183
    %v268 = vunpack.c.l.b16 %v184
    %v269 = vunpack.c.h.b16 %v184
    %v270 = vunpack.c.l.b16 %v185
    %v271 = vunpack.c.h.b16 %v185
    %v272 = vunpack.c.l.b16 %v186
    %v273 = vunpack.c.h.b16 %v186
    %v274 = vunpack.c.l.b16 %v187
    %v275 = vunpack.c.h.b16 %v187
    %v276 = vunpack.c.l.b16 %v188
    %v277 = vunpack.c.h.b16 %v188
    %v278 = vunpack.c.l.b16 %v189
    %v279 = vunpack.c.h.b16 %v189
    %v280 = vunpack.c.l.b16 %v190
    %v281 = vunpack.c.h.b16 %v190
    %v282 = vunpack.c.l.b16 %v191
    %v283 = vunpack.c.h.b16 %v191
    %v284 = vunpack.c.l.b16 %v192
    %v285 = vunpack.c.h.b16 %v192
    %v286 = vunpack.c.l.b16 %v193
    %v287 = vunpack.c.h.b16 %v193
    %v288 = vunpack.c.l.b16 %v194
    %v289 = vunpack.c.h.b16 %v194
    %v290 = vunpack.c.l.b16 %v195
    %v291 = vunpack.c.h.b16 %v195
    %v292 = vunpack.c.l.b16 %v196
    %v293 = vunpack.c.h.b16 %v196
    %v294 = vunpack.c.l.b16 %v197
    %v295 = vunpack.c.h.b16 %v197
    %v296 = vunpack.c.l.b16 %v198
    %v297 = vunpack.c.h.b16 %v198
    %v298 = vunpack.c.l.b16 %v199
    %v299 = vunpack.c.h.b16 %v199
    %v300 = vunpack.c.l.b16 %v200
    %v301 = vunpack.c.h.b16 %v200
    %v302 = vunpack.c.l.b16 %v201
    %v303 = vunpack.c.h.b16 %v201
    %v304 = vunpack.c.l.b16 %v202
    %v305 = vunpack.c.h.b16 %v202
    %v306 = vunpack.c.l.b16 %v203
    %v307 = vunpack.c.h.b16 %v203
    %v308 = vunpack.c.l.b16 %v204
    %v309 = vunpack.c.h.b16 %v204
    %v310 = vunpack.c.l.b16 %v205
    %v311 = vunpack.c.h.b16 %v205
    %v312 = vunpack.c.l.b16 %v206
    %v313 = vunpack.c.h.b16 %v206
    %v314 = vunpack.c.l.b16 %v207
    %v315 = vunpack.c.h.b16 %v207
    %v316 = vpack.c.b16 %v254, %v252
    %v317 = vpack.c.b16 %v255, %v253
    %v318 = vpack.c.b16 %v258, %v256
    %v319 = vpack.c.b16 %v259, %v257
    %v320 = vpack.c.b16 %v262, %v260
    %v321 = vpack.c.b16 %v263, %v261
    %v322 = vpack.c.b16 %v266, %v264
    %v323 = vpack.c.b16 %v267, %v265
    %v324 = vpack.c.b16 %v270, %v268
    %v325 = vpack.c.b16 %v271, %v269
    %v326 = vpack.c.b16 %v274, %v272
    %v327 = vpack.c.b16 %v275, %v273
    %v328 = vpack.c.b16 %v278, %v276
    %v329 = vpack.c.b16 %v279, %v277
    %v330 = vpack.c.b16 %v282, %v280
    %v331 = vpack.c.b16 %v283, %v281
    %v332 = vpack.c.b16 %v286, %v284
    %v333 = vpack.c.b16 %v287, %v285
    %v334 = vpack.c.b16 %v290, %v288
    %v335 = vpack.c.b16 %v291, %v289
    %v336 = vpack.c.b16 %v294, %v292
    %v337 = vpack.c.b16 %v295, %v293
    %v338 = vpack.c.b16 %v298, %v296
    %v339 = vpack.c.b16 %v299, %v297
    %v340 = vpack.c.b16 %v302, %v300
    %v341 = vpack.c.b16 %v303, %v301
    %v342 = vpack.c.b16 %v306, %v304
    %v343 = vpack.c.b16 %v307, %v305
    %v344 = vpack.c.b16 %v310, %v308
    %v345 = vpack.c.b16 %v311, %v309
    %v346 = vpack.c.b16 %v314, %v312
    %v347 = vpack.c.b16 %v315, %v313
    %380 = vmatprep.subr.bf16.mxu0 %v317
    %381 = vmatpush1.bf16.msra.mxu0 %v316
    %382 = vmatprep.subr.bf16.mxu0 %v319
    %383 = vmatpush1.bf16.msra.mxu0 %v318
    %384 = vmatprep.subr.bf16.mxu0 %v321
    %385 = vmatpush1.bf16.msra.mxu0 %v320
    %386 = vmatprep.subr.bf16.mxu0 %v323
    %387 = vmatpush1.bf16.msra.mxu0 %v322
    %388 = vmatprep.subr.bf16.mxu0 %v325
    %389 = vmatpush1.bf16.msra.mxu0 %v324
    %390 = vmatprep.subr.bf16.mxu0 %v327
    %391 = vmatpush1.bf16.msra.mxu0 %v326
    %392 = vmatprep.subr.bf16.mxu0 %v329
    %393 = vmatpush1.bf16.msra.mxu0 %v328
    %394 = vmatprep.subr.bf16.mxu0 %v331
    %395 = vmatpush1.bf16.msra.mxu0 %v330
    %396 = vmatprep.subr.bf16.mxu0 %v333
    %397 = vmatpush1.bf16.msra.mxu0 %v332
    %398 = vmatprep.subr.bf16.mxu0 %v335
    %399 = vmatpush1.bf16.msra.mxu0 %v334
    %400 = vmatprep.subr.bf16.mxu0 %v337
    %401 = vmatpush1.bf16.msra.mxu0 %v336
    %402 = vmatprep.subr.bf16.mxu0 %v339
    %403 = vmatpush1.bf16.msra.mxu0 %v338
    %404 = vmatprep.subr.bf16.mxu0 %v341
    %405 = vmatpush1.bf16.msra.mxu0 %v340
    %406 = vmatprep.subr.bf16.mxu0 %v343
    %407 = vmatpush1.bf16.msra.mxu0 %v342
    %408 = vmatprep.subr.bf16.mxu0 %v345
    %409 = vmatpush1.bf16.msra.mxu0 %v344
    %410 = vmatprep.subr.bf16.mxu0 %v347
    %411 = vmatpush1.bf16.msra.mxu0 %v346
    %412 = vmatprep.mubr.bf16.mxu0 %v175
    %413 = vmatmul.mubr.bf16.gmra.mrb[0].mxu0 %v174
    %v414 = vpop.f32.mrb[0].mxu0
    %v415 = vadd.f32 %v213, %v414
    %v416 = vpop.f32.mrb[0].mxu0
    %v417 = vadd.f32 %v217, %v416
    %v418 = vpop.f32.mrb[0].mxu0
    %v419 = vpop.f32.mrb[0].mxu0
    %420 = vdwg.mxu0
    %v421 = vmax.f32 %v415, 0.0
    %v422 = vmax.f32 %v417, 0.0
    %v423 = vpack.c.bf16 %v421, %v421
    %v424 = vpack.c.bf16 %v422, %v422
    %v425 = vld [vmem:[#allocation9] sm:$0xff]
    %v426 = vld [vmem:[#allocation9 + $0x8] sm:$0xff]
    %v427 = vld [vmem:[#allocation9 + $0x10] sm:$0xff]
    %v428 = vld [vmem:[#allocation9 + $0x18] sm:$0xff]
    %v429 = vld [vmem:[#allocation9 + $0x20] sm:$0xff]
    %v430 = vld [vmem:[#allocation9 + $0x28] sm:$0xff]
    %v431 = vld [vmem:[#allocation9 + $0x30] sm:$0xff]
    %v432 = vld [vmem:[#allocation9 + $0x38] sm:$0xff]
    %v433 = vld [vmem:[#allocation9 + $0x40] sm:$0xff]
    %v434 = vld [vmem:[#allocation9 + $0x48] sm:$0xff]
    %v435 = vld [vmem:[#allocation9 + $0x50] sm:$0xff]
    %v436 = vld [vmem:[#allocation9 + $0x58] sm:$0xff]
    %v437 = vld [vmem:[#allocation9 + $0x60] sm:$0xff]
    %v438 = vld [vmem:[#allocation9 + $0x68] sm:$0xff]
    %v439 = vld [vmem:[#allocation9 + $0x70] sm:$0xff]
    %v440 = vld [vmem:[#allocation9 + $0x78] sm:$0xff]
    %v441 = vld [vmem:[#allocation9 + $0x80] sm:$0xff]
    %v442 = vld [vmem:[#allocation9 + $0x88] sm:$0xff]
    %v443 = vld [vmem:[#allocation9 + $0x90] sm:$0xff]
    %v444 = vld [vmem:[#allocation9 + $0x98] sm:$0xff]
    %v445 = vld [vmem:[#allocation9 + $0xa0] sm:$0xff]
    %v446 = vld [vmem:[#allocation9 + $0xa8] sm:$0xff]
    %v447 = vld [vmem:[#allocation9 + $0xb0] sm:$0xff]
    %v448 = vld [vmem:[#allocation9 + $0xb8] sm:$0xff]
    %v449 = vld [vmem:[#allocation9 + $0xc0] sm:$0xff]
    %v450 = vld [vmem:[#allocation9 + $0xc8] sm:$0xff]
    %v451 = vld [vmem:[#allocation9 + $0xd0] sm:$0xff]
    %v452 = vld [vmem:[#allocation9 + $0xd8] sm:$0xff]
    %v453 = vld [vmem:[#allocation9 + $0xe0] sm:$0xff]
    %v454 = vld [vmem:[#allocation9 + $0xe8] sm:$0xff]
    %v455 = vld [vmem:[#allocation9 + $0xf0] sm:$0xff]
    %v456 = vld [vmem:[#allocation9 + $0xf8] sm:$0xff]
    %v457 = vld [vmem:[%s6] sm:$0x3]
    %v459 = vlaneseq
    %v460 = vshrl.u32 %v459, 7
    %v461 = vsub.s32 0, %v460
    %v462 = vrot.slane %v457, %v461
    %v463 = vlaneseq
    %v464 = vshrl.u32 %v463, 7
    %v465 = vsub.s32 1, %v464
    %v466 = vrot.slane %v457, %v465
    %v501 = vunpack.c.l.b16 %v425
    %v502 = vunpack.c.h.b16 %v425
    %v503 = vunpack.c.l.b16 %v426
    %v504 = vunpack.c.h.b16 %v426
    %v505 = vunpack.c.l.b16 %v427
    %v506 = vunpack.c.h.b16 %v427
    %v507 = vunpack.c.l.b16 %v428
    %v508 = vunpack.c.h.b16 %v428
    %v509 = vunpack.c.l.b16 %v429
    %v510 = vunpack.c.h.b16 %v429
    %v511 = vunpack.c.l.b16 %v430
    %v512 = vunpack.c.h.b16 %v430
    %v513 = vunpack.c.l.b16 %v431
    %v514 = vunpack.c.h.b16 %v431
    %v515 = vunpack.c.l.b16 %v432
    %v516 = vunpack.c.h.b16 %v432
    %v517 = vunpack.c.l.b16 %v433
    %v518 = vunpack.c.h.b16 %v433
    %v519 = vunpack.c.l.b16 %v434
    %v520 = vunpack.c.h.b16 %v434
    %v521 = vunpack.c.l.b16 %v435
    %v522 = vunpack.c.h.b16 %v435
    %v523 = vunpack.c.l.b16 %v436
    %v524 = vunpack.c.h.b16 %v436
    %v525 = vunpack.c.l.b16 %v437
    %v526 = vunpack.c.h.b16 %v437
    %v527 = vunpack.c.l.b16 %v438
    %v528 = vunpack.c.h.b16 %v438
    %v529 = vunpack.c.l.b16 %v439
    %v530 = vunpack.c.h.b16 %v439
    %v531 = vunpack.c.l.b16 %v440
    %v532 = vunpack.c.h.b16 %v440
    %v533 = vunpack.c.l.b16 %v441
    %v534 = vunpack.c.h.b16 %v441
    %v535 = vunpack.c.l.b16 %v442
    %v536 = vunpack.c.h.b16 %v442
    %v537 = vunpack.c.l.b16 %v443
    %v538 = vunpack.c.h.b16 %v443
    %v539 = vunpack.c.l.b16 %v444
    %v540 = vunpack.c.h.b16 %v444
    %v541 = vunpack.c.l.b16 %v445
    %v542 = vunpack.c.h.b16 %v445
    %v543 = vunpack.c.l.b16 %v446
    %v544 = vunpack.c.h.b16 %v446
    %v545 = vunpack.c.l.b16 %v447
    %v546 = vunpack.c.h.b16 %v447
    %v547 = vunpack.c.l.b16 %v448
    %v548 = vunpack.c.h.b16 %v448
    %v549 = vunpack.c.l.b16 %v449
    %v550 = vunpack.c.h.b16 %v449
    %v551 = vunpack.c.l.b16 %v450
    %v552 = vunpack.c.h.b16 %v450
    %v553 = vunpack.c.l.b16 %v451
    %v554 = vunpack.c.h.b16 %v451
    %v555 = vunpack.c.l.b16 %v452
    %v556 = vunpack.c.h.b16 %v452
    %v557 = vunpack.c.l.b16 %v453
    %v558 = vunpack.c.h.b16 %v453
    %v559 = vunpack.c.l.b16 %v454
    %v560 = vunpack.c.h.b16 %v454
    %v561 = vunpack.c.l.b16 %v455
    %v562 = vunpack.c.h.b16 %v455
    %v563 = vunpack.c.l.b16 %v456
    %v564 = vunpack.c.h.b16 %v456
    %v565 = vpack.c.b16 %v503, %v501
    %v566 = vpack.c.b16 %v504, %v502
    %v567 = vpack.c.b16 %v507, %v505
    %v568 = vpack.c.b16 %v508, %v506
    %v569 = vpack.c.b16 %v511, %v509
    %v570 = vpack.c.b16 %v512, %v510
    %v571 = vpack.c.b16 %v515, %v513
    %v572 = vpack.c.b16 %v516, %v514
    %v573 = vpack.c.b16 %v519, %v517
    %v574 = vpack.c.b16 %v520, %v518
    %v575 = vpack.c.b16 %v523, %v521
    %v576 = vpack.c.b16 %v524, %v522
    %v577 = vpack.c.b16 %v527, %v525
    %v578 = vpack.c.b16 %v528, %v526
    %v579 = vpack.c.b16 %v531, %v529
    %v580 = vpack.c.b16 %v532, %v530
    %v581 = vpack.c.b16 %v535, %v533
    %v582 = vpack.c.b16 %v536, %v534
    %v583 = vpack.c.b16 %v539, %v537
    %v584 = vpack.c.b16 %v540, %v538
    %v585 = vpack.c.b16 %v543, %v541
    %v586 = vpack.c.b16 %v544, %v542
    %v587 = vpack.c.b16 %v547, %v545
    %v588 = vpack.c.b16 %v548, %v546
    %v589 = vpack.c.b16 %v551, %v549
    %v590 = vpack.c.b16 %v552, %v550
    %v591 = vpack.c.b16 %v555, %v553
    %v592 = vpack.c.b16 %v556, %v554
    %v593 = vpack.c.b16 %v559, %v557
    %v594 = vpack.c.b16 %v560, %v558
    %v595 = vpack.c.b16 %v563, %v561
    %v596 = vpack.c.b16 %v564, %v562
    %629 = vmatprep.subr.bf16.mxu0 %v566
    %630 = vmatpush1.bf16.msra.mxu0 %v565
    %631 = vmatprep.subr.bf16.mxu0 %v568
    %632 = vmatpush1.bf16.msra.mxu0 %v567
    %633 = vmatprep.subr.bf16.mxu0 %v570
    %634 = vmatpush1.bf16.msra.mxu0 %v569
    %635 = vmatprep.subr.bf16.mxu0 %v572
    %636 = vmatpush1.bf16.msra.mxu0 %v571
    %637 = vmatprep.subr.bf16.mxu0 %v574
    %638 = vmatpush1.bf16.msra.mxu0 %v573
    %639 = vmatprep.subr.bf16.mxu0 %v576
    %640 = vmatpush1.bf16.msra.mxu0 %v575
    %641 = vmatprep.subr.bf16.mxu0 %v578
    %642 = vmatpush1.bf16.msra.mxu0 %v577
    %643 = vmatprep.subr.bf16.mxu0 %v580
    %644 = vmatpush1.bf16.msra.mxu0 %v579
    %645 = vmatprep.subr.bf16.mxu0 %v582
    %646 = vmatpush1.bf16.msra.mxu0 %v581
    %647 = vmatprep.subr.bf16.mxu0 %v584
    %648 = vmatpush1.bf16.msra.mxu0 %v583
    %649 = vmatprep.subr.bf16.mxu0 %v586
    %650 = vmatpush1.bf16.msra.mxu0 %v585
    %651 = vmatprep.subr.bf16.mxu0 %v588
    %652 = vmatpush1.bf16.msra.mxu0 %v587
    %653 = vmatprep.subr.bf16.mxu0 %v590
    %654 = vmatpush1.bf16.msra.mxu0 %v589
    %655 = vmatprep.subr.bf16.mxu0 %v592
    %656 = vmatpush1.bf16.msra.mxu0 %v591
    %657 = vmatprep.subr.bf16.mxu0 %v594
    %658 = vmatpush1.bf16.msra.mxu0 %v593
    %659 = vmatprep.subr.bf16.mxu0 %v596
    %660 = vmatpush1.bf16.msra.mxu0 %v595
    %661 = vmatprep.mubr.bf16.mxu0 %v424
    %662 = vmatmul.mubr.bf16.gmra.mrb[0].mxu0 %v423
    %v663 = vpop.f32.mrb[0].mxu0
    %v664 = vadd.f32 %v462, %v663
    %v665 = vpop.f32.mrb[0].mxu0
    %v666 = vadd.f32 %v466, %v665
    %v667 = vpop.f32.mrb[0].mxu0
    %v668 = vpop.f32.mrb[0].mxu0
    %669 = vdwg.mxu0
    %v670 = vmax.f32 %v664, 0.0
    %v671 = vmax.f32 %v666, 0.0
    %v672 = vld [vmem:[%s7] sm:$0x3]
    %v673 = vld [vmem:[#allocation2] sm:$0x1]
    %675 = vset.pattern.permute.xlu0 0
    %676 = vperm.xlu0 %675, %v673
    %v677 = vpop.permute.xlu0 %676
    %v679 = vlaneseq
    %v680 = vshrl.u32 %v679, 7
    %v681 = vsub.s32 0, %v680
    %v682 = vrot.slane %v677, %v681
    %v684 = vlaneseq
    %v685 = vshrl.u32 %v684, 7
    %v686 = vsub.s32 0, %v685
    %v687 = vrot.slane %v672, %v686
    %v688 = vlaneseq
    %v689 = vshrl.u32 %v688, 7
    %v690 = vsub.s32 1, %v689
    %v691 = vrot.slane %v672, %v690
    %694 = vmatprep.subr.mxu0 %v671
    %695 = vmatpush1.xpose.msra.mxu0 %v670
    %696 = vmatprep.subr.mxu0 0.0
    %697 = vmatpush1.xpose.msra.mxu0 0.0
    %698 = vmatprep.subr.mxu0 0.0
    %699 = vmatpush1.xpose.msra.mxu0 0.0
    %700 = vmatprep.subr.mxu0 0.0
    %701 = vmatpush1.xpose.msra.mxu0 0.0
    %702 = vmatprep.subr.mxu0 0.0
    %703 = vmatpush1.xpose.msra.mxu0 0.0
    %704 = vmatprep.subr.mxu0 0.0
    %705 = vmatpush1.xpose.msra.mxu0 0.0
    %706 = vmatprep.subr.mxu0 0.0
    %707 = vmatpush1.xpose.msra.mxu0 0.0
    %708 = vmatprep.subr.mxu0 0.0
    %709 = vmatpush1.xpose.msra.mxu0 0.0
    %710 = vmatprep.subr.mxu0 0.0
    %711 = vmatpush1.xpose.msra.mxu0 0.0
    %712 = vmatprep.subr.mxu0 0.0
    %713 = vmatpush1.xpose.msra.mxu0 0.0
    %714 = vmatprep.subr.mxu0 0.0
    %715 = vmatpush1.xpose.msra.mxu0 0.0
    %716 = vmatprep.subr.mxu0 0.0
    %717 = vmatpush1.xpose.msra.mxu0 0.0
    %718 = vmatprep.subr.mxu0 0.0
    %719 = vmatpush1.xpose.msra.mxu0 0.0
    %720 = vmatprep.subr.mxu0 0.0
    %721 = vmatpush1.xpose.msra.mxu0 0.0
    %722 = vmatprep.subr.mxu0 0.0
    %723 = vmatpush1.xpose.msra.mxu0 0.0
    %724 = vmatprep.subr.mxu0 0.0
    %725 = vmatpush1.xpose.msra.mxu0 0.0
    %726 = vmatprep.subr.mxu0 0.0
    %727 = vmatpush1.xpose.msra.mxu0 0.0
    %728 = vmatprep.subr.mxu0 0.0
    %729 = vmatpush1.xpose.msra.mxu0 0.0
    %730 = vmatprep.subr.mxu0 0.0
    %731 = vmatpush1.xpose.msra.mxu0 0.0
    %732 = vmatprep.subr.mxu0 0.0
    %733 = vmatpush1.xpose.msra.mxu0 0.0
    %734 = vmatprep.subr.mxu0 0.0
    %735 = vmatpush1.xpose.msra.mxu0 0.0
    %736 = vmatprep.subr.mxu0 0.0
    %737 = vmatpush1.xpose.msra.mxu0 0.0
    %738 = vmatprep.subr.mxu0 0.0
    %739 = vmatpush1.xpose.msra.mxu0 0.0
    %740 = vmatprep.subr.mxu0 0.0
    %741 = vmatpush1.xpose.msra.mxu0 0.0
    %742 = vmatprep.subr.mxu0 0.0
    %743 = vmatpush1.xpose.msra.mxu0 0.0
    %744 = vmatprep.subr.mxu0 0.0
    %745 = vmatpush1.xpose.msra.mxu0 0.0
    %746 = vmatprep.subr.mxu0 0.0
    %747 = vmatpush1.xpose.msra.mxu0 0.0
    %748 = vmatprep.subr.mxu0 0.0
    %749 = vmatpush1.xpose.msra.mxu0 0.0
    %750 = vmatprep.subr.mxu0 0.0
    %751 = vmatpush1.xpose.msra.mxu0 0.0
    %752 = vmatprep.subr.mxu0 0.0
    %753 = vmatpush1.xpose.msra.mxu0 0.0
    %754 = vmatprep.subr.mxu0 0.0
    %755 = vmatpush1.xpose.msra.mxu0 0.0
    %756 = vmatprep.subr.mxu0 0.0
    %757 = vmatpush1.xpose.msra.mxu0 0.0
    %758 = vmatprep.mubr.f32.mxu0 %v691
    %759 = vmatmul.mubr.f32.gmra.mrb[0].mxu0 %v687
    %v760 = vpop.f32.mrb[0].mxu0
    %v761 = vadd.f32 %v682, %v760
    %v762 = vpop.f32.mrb[0].mxu0
    %763 = vdwg.mxu0
    %v764 = vtanh.pop %v761
    %v765 = vmul.f32 %v764, 2.0
    %vm766 = vcmask 57344
    %767 = vst.msk [vmem:[#allocation11] sm:$0x1] %vm766, %v765
    // Predicated region
    $region54: #{tpu_custom_call.1} parent=1 // pred_check
      _
    $region55: #{tpu_custom_call.1} parent=1 // pred_check_branch
      %769 = sbr.rel (0) target = $region57
    $region56: #{tpu_custom_call.1} parent=1 // pred_region
      %s771 = ssub.s32 16, 16
      %772 = vsyncadd [#allocation5], %s771
      %s774 = sshll.u32 [#allocation11], 4
      %s775 = int_to_ptr.vmem [resolvable:$true] %s774
      %777 = dma.vmem_to_hbm [thread:$0]  %s775, 16, %s9, [#allocation5]
    $region57: #{tpu_custom_call.1} parent=1 // pred_fallthru
      _
    // Predicated region
    $region58: #{tpu_custom_call.1} parent=1 // pred_check
      _
    $region59: #{tpu_custom_call.1} parent=1 // pred_check_branch
      %779 = sbr.rel (0) target = $region61
    $region60: #{tpu_custom_call.1} parent=1 // pred_region
      %780 = dma.done [#allocation5], 16
    $region61: #{tpu_custom_call.1} parent=1 // pred_fallthru
      _
    %781 = vsyncpa [#allocation4], 1
    %782 = vsyncpa [#allocation7], 1
    %783 = vsyncpa [#allocation10], 1
    %784 = vsyncpa [#allocation5], 1

</llo_original>
